<compile_context>
chip_gen: v7x
topology: tpu7x:2x2x1
jax: 0.10.0
libtpu: 0.0.40
codegen_flags: <defaults>
</compile_context>

<pallas_src>
import jax
import jax.numpy as jnp
from jax import lax
from jax.experimental import pallas as pl
from jax.experimental.pallas import tpu as pltpu


def _critic_kernel(x_ref, w1T_ref, b1_ref, w2T_ref, b2_ref, w3T_ref, b3_ref, o_ref):
    """One batch tile of the value MLP, computed in lane-dense (batch-on-lanes) form.

    x_ref  : [blk, ob_dim]  observation tile, streamed untransposed
    wKT    : [out, in]      transposed weights (VMEM resident)
    bK     : [out, 1]       biases (broadcast along lanes, f32)
    o_ref  : [1, blk]       state values for this tile (unmasked lane-dense stores)
    """
    x = x_ref[...]                      # [blk, ob_dim]
    w1 = w1T_ref[...]                   # [size, ob_dim]

    # Layer 1: contract on ob_dim so the result lands lane-dense: [size, blk].
    # (MXU absorbs the transpose; no host-side x.T pass.)
    h = lax.dot_general(
        w1, x,
        dimension_numbers=(((1,), (1,)), ((), ())),
        preferred_element_type=jnp.float32,
    )
    h = jnp.tanh(h + b1_ref[...])                                   # f32 elementwise

    # Layer 2: [size, size] @ [size, blk] -> [size, blk]
    h = jnp.tanh(
        jnp.dot(w2T_ref[...], h.astype(w2T_ref.dtype),
                preferred_element_type=jnp.float32)
        + b2_ref[...]
    )

    # Output layer (identity activation): [1, size] @ [size, blk] -> [1, blk]
    out = (
        jnp.dot(w3T_ref[...], h.astype(w3T_ref.dtype),
                preferred_element_type=jnp.float32)
        + b3_ref[...]
    )
    o_ref[...] = out.astype(o_ref.dtype)


def _choose_block(B, block_b):
    """128-aligned batch tile: as big as block_b allows, capped so the grid
    keeps >=2 steps (v7x megacore + double-buffering) whenever B permits."""
    b128 = 128 * pl.cdiv(B, 128)                      # batch rounded to lane multiple
    blk = 128 * pl.cdiv(max(128, min(int(block_b), b128)), 128)
    half = (b128 // 2) // 128 * 128                   # largest tile giving >=2 steps
    if half >= 128:
        blk = min(blk, half)
    return blk


def vanilla_critic_forward(x, params, *, block_b=2048, use_bf16=False):
    """Pallas forward for VanillaCritic.

    x:      [B, ob_dim] float32 observations (any B; tail-padded internally).
    params: (w1, b1, w2, b2, w3, b3), wK: [in, out], bK: [1, out] (PyTorch-style).
    Returns: [B, 1] float32 state-values (same layout as the nn.Module forward).
    """
    w1, b1, w2, b2, w3, b3 = params
    B, ob_dim = x.shape
    size = w1.shape[1]

    blk = _choose_block(B, block_b)
    n_tiles = pl.cdiv(B, blk)
    B_pad = blk * n_tiles

    compute_dtype = jnp.bfloat16 if use_bf16 else jnp.float32

    # Streamed input: no transpose, tail-only pad (nothing materialized when aligned).
    x_in = x.astype(compute_dtype)
    if B_pad != B:
        x_in = jnp.pad(x_in, ((0, B_pad - B), (0, 0)))

    # Transposed weights / column biases: tiny VMEM residents.
    w1T = w1.T.astype(compute_dtype)      # [size, ob_dim]
    w2T = w2.T.astype(compute_dtype)      # [size, size]
    w3T = w3.T.astype(compute_dtype)      # [1, size]
    b1T = b1.T.astype(jnp.float32)        # [size, 1]
    b2T = b2.T.astype(jnp.float32)        # [size, 1]
    b3T = b3.T.astype(jnp.float32)        # [1, 1]

    in_specs = [
        pl.BlockSpec((blk, ob_dim), lambda i: (i, 0)),    # x tile (streamed)
        pl.BlockSpec((size, ob_dim), lambda i: (0, 0)),   # W1^T (resident)
        pl.BlockSpec((size, 1), lambda i: (0, 0)),        # b1
        pl.BlockSpec((size, size), lambda i: (0, 0)),     # W2^T
        pl.BlockSpec((size, 1), lambda i: (0, 0)),        # b2
        pl.BlockSpec((1, size), lambda i: (0, 0)),        # W3^T
        pl.BlockSpec((1, 1), lambda i: (0, 0)),           # b3
    ]
    out_spec = pl.BlockSpec((1, blk), lambda i: (0, i))   # lane-dense output slab

    param_bytes = sum(
        int(a.size) * a.dtype.itemsize for a in (w1T, b1T, w2T, b2T, w3T, b3T)
    )
    cost = pl.CostEstimate(
        flops=int(2 * B_pad * (ob_dim * size + size * size + size)),
        transcendentals=int(2 * B_pad * size),
        bytes_accessed=int(x_in.size * x_in.dtype.itemsize + 4 * B_pad + param_bytes),
    )

    vT = pl.pallas_call(
        _critic_kernel,
        out_shape=jax.ShapeDtypeStruct((1, B_pad), jnp.float32),
        grid_spec=pl.GridSpec(
            grid=(n_tiles,),
            in_specs=in_specs,
            out_specs=out_spec,
        ),
        compiler_params=pltpu.CompilerParams(
            dimension_semantics=("parallel",),   # megacore-shardable on v7x
        ),
        cost_estimate=cost,
    )(x_in, w1T, b1T, w2T, b2T, w3T, b3T)

    # Back to the module's [B, 1] layout; drop batch padding.
    return vT[:, :B].T


def init_critic_params(key, ob_dim, size):
    """Deterministic init mimicking nn.Linear default (U[-1/sqrt(fan_in), +])."""

    def linear(k, fan_in, fan_out):
        kw, kb = jax.random.split(k)
        bound = 1.0 / jnp.sqrt(jnp.float32(fan_in))
        w = jax.random.uniform(kw, (fan_in, fan_out), jnp.float32, -bound, bound)
        b = jax.random.uniform(kb, (1, fan_out), jnp.float32, -bound, bound)
        return w, b

    k1, k2, k3 = jax.random.split(key, 3)
    w1, b1 = linear(k1, ob_dim, size)      # hidden layer 1
    w2, b2 = linear(k2, size, size)        # hidden layer 2
    w3, b3 = linear(k3, size, 1)           # output layer (identity activation)
    return (w1, b1, w2, b2, w3, b3)


def _reference_forward(x, params):
    w1, b1, w2, b2, w3, b3 = params
    h = jnp.tanh(x @ w1 + b1)
    h = jnp.tanh(h @ w2 + b2)
    return h @ w3 + b3


if __name__ == "__main__":
    # Typical critic minibatch of flat observations: [B, ob_dim].
    B, ob_dim, n_layers, size = 256, 4, 2, 32

    key = jax.random.PRNGKey(0)
    k_obs, k_params = jax.random.split(key)

    obs = jax.random.normal(k_obs, (B, ob_dim), dtype=jnp.float32)
    params = init_critic_params(k_params, ob_dim, size)

    # f32 path: blk capped to B/2 -> blk=128, grid=(2,) "parallel" steps, so a
    # v7x megacore can shard the batch across both TensorCores. Bit-accurate.
    v = vanilla_critic_forward(obs, params)
    v = jax.block_until_ready(v)

    v_ref = _reference_forward(obs, params)
    assert v.shape == (B, 1)
    assert jnp.allclose(v, v_ref, atol=1e-5, rtol=1e-5)

    # bf16 operand-stream path (v6e/v7x recommendation): halves streamed bytes,
    # keeps f32 accumulation / tanh; looser tolerance due to input/weight rounding.
    v_bf16 = jax.block_until_ready(vanilla_critic_forward(obs, params, use_bf16=True))
    assert jnp.allclose(v_bf16, v_ref, atol=2e-2, rtol=2e-2)

    # critic_prediction() would additionally squeeze(-1); that's pure glue.
    # TODO(synk): update() (Adam + MSE training loop) is host-side training logic,
    # not part of the forward kernel.
    print("KERNEL_OK")
</pallas_src>

<mosaic_0001>
module attributes {stable_mosaic.version = 11 : i64} {
  func.func @_critic_kernel(%arg0: i32, %arg1: memref<128x4xf32, #tpu.memory_space<vmem>>, %arg2: memref<32x4xf32, #tpu.memory_space<vmem>>, %arg3: memref<32x1xf32, #tpu.memory_space<vmem>>, %arg4: memref<32x32xf32, #tpu.memory_space<vmem>>, %arg5: memref<32x1xf32, #tpu.memory_space<vmem>>, %arg6: memref<1x32xf32, #tpu.memory_space<vmem>>, %arg7: memref<1x1xf32, #tpu.memory_space<vmem>>, %arg8: memref<1x128xf32, #tpu.memory_space<vmem>>) attributes {dimension_semantics = [#tpu.dimension_semantics<parallel>], iteration_bounds = array<i64: 2>, scalar_prefetch = 0 : i64, scratch_operands = 0 : i64, tpu.core_type = #tpu.core_type<tc>, window_params = [{transform_indices = @transform_0, window_bounds = array<i64: 128, 4>}, {pipeline_mode = #tpu.pipeline_mode<synchronous>, transform_indices = @transform_1, window_bounds = array<i64: 32, 4>}, {pipeline_mode = #tpu.pipeline_mode<synchronous>, transform_indices = @transform_2, window_bounds = array<i64: 32, 1>}, {pipeline_mode = #tpu.pipeline_mode<synchronous>, transform_indices = @transform_3, window_bounds = array<i64: 32, 32>}, {pipeline_mode = #tpu.pipeline_mode<synchronous>, transform_indices = @transform_4, window_bounds = array<i64: 32, 1>}, {pipeline_mode = #tpu.pipeline_mode<synchronous>, transform_indices = @transform_5, window_bounds = array<i64: 1, 32>}, {pipeline_mode = #tpu.pipeline_mode<synchronous>, transform_indices = @transform_6, window_bounds = array<i64: 1, 1>}, {transform_indices = @transform_7, window_bounds = array<i64: 1, 128>}]} {
    %c0 = arith.constant 0 : index
    %c0_0 = arith.constant 0 : index
    %0 = vector.load %arg1[%c0, %c0_0] : memref<128x4xf32, #tpu.memory_space<vmem>>, vector<128x4xf32>
    %c0_1 = arith.constant 0 : index
    %c0_2 = arith.constant 0 : index
    %1 = vector.load %arg2[%c0_1, %c0_2] : memref<32x4xf32, #tpu.memory_space<vmem>>, vector<32x4xf32>
    %cst = arith.constant dense<0.000000e+00> : vector<32x128xf32>
    %2 = tpu.matmul %1, %0, %cst {dimension_numbers = #tpu.dot_dimension_numbers<[1], [1], [0], [0], [0, 0, 1, 0], [], []>} : vector<32x4xf32>, vector<128x4xf32>, vector<32x128xf32> -> vector<32x128xf32>
    %c0_3 = arith.constant 0 : index
    %c0_4 = arith.constant 0 : index
    %3 = vector.load %arg3[%c0_3, %c0_4] : memref<32x1xf32, #tpu.memory_space<vmem>>, vector<32x1xf32>
    %4 = vector.broadcast %3 : vector<32x1xf32> to vector<32x128xf32>
    %5 = arith.addf %2, %4 : vector<32x128xf32>
    %6 = math.tanh %5 : vector<32x128xf32>
    %c0_5 = arith.constant 0 : index
    %c0_6 = arith.constant 0 : index
    %7 = vector.load %arg4[%c0_5, %c0_6] : memref<32x32xf32, #tpu.memory_space<vmem>>, vector<32x32xf32>
    %cst_7 = arith.constant dense<0.000000e+00> : vector<32x128xf32>
    %8 = tpu.matmul %7, %6, %cst_7 {dimension_numbers = #tpu.dot_dimension_numbers<[1], [0], [0], [1], [0, 0, 1, 1], [], []>} : vector<32x32xf32>, vector<32x128xf32>, vector<32x128xf32> -> vector<32x128xf32>
    %c0_8 = arith.constant 0 : index
    %c0_9 = arith.constant 0 : index
    %9 = vector.load %arg5[%c0_8, %c0_9] : memref<32x1xf32, #tpu.memory_space<vmem>>, vector<32x1xf32>
    %10 = vector.broadcast %9 : vector<32x1xf32> to vector<32x128xf32>
    %11 = arith.addf %8, %10 : vector<32x128xf32>
    %12 = math.tanh %11 : vector<32x128xf32>
    %c0_10 = arith.constant 0 : index
    %c0_11 = arith.constant 0 : index
    %13 = vector.load %arg6[%c0_10, %c0_11] : memref<1x32xf32, #tpu.memory_space<vmem>>, vector<1x32xf32>
    %cst_12 = arith.constant dense<0.000000e+00> : vector<1x128xf32>
    %14 = tpu.matmul %13, %12, %cst_12 {dimension_numbers = #tpu.dot_dimension_numbers<[1], [0], [0], [1], [0, 0, 1, 1], [], []>} : vector<1x32xf32>, vector<32x128xf32>, vector<1x128xf32> -> vector<1x128xf32>
    %c0_13 = arith.constant 0 : index
    %c0_14 = arith.constant 0 : index
    %15 = vector.load %arg7[%c0_13, %c0_14] : memref<1x1xf32, #tpu.memory_space<vmem>>, vector<1x1xf32>
    %16 = vector.broadcast %15 : vector<1x1xf32> to vector<1x128xf32>
    %17 = arith.addf %14, %16 : vector<1x128xf32>
    %c0_15 = arith.constant 0 : index
    %c0_16 = arith.constant 0 : index
    %18 = vector.load %arg8[%c0_15, %c0_16] : memref<1x128xf32, #tpu.memory_space<vmem>>, vector<1x128xf32>
    tpu.vector_store %arg8[%c0_15, %c0_16], %17 {strides = array<i32>} : memref<1x128xf32, #tpu.memory_space<vmem>>, vector<1x128xf32>,
    return
  }
  func.func @transform_0(%arg0: i32) -> (i32, i32) {
    %c0_i32 = arith.constant 0 : i32
    %c0_i32_0 = arith.constant 0 : i32
    return %arg0, %c0_i32 : i32, i32
  }
  func.func @transform_1(%arg0: i32) -> (i32, i32) {
    %c0_i32 = arith.constant 0 : i32
    %c0_i32_0 = arith.constant 0 : i32
    %c0_i32_1 = arith.constant 0 : i32
    return %c0_i32, %c0_i32_0 : i32, i32
  }
  func.func @transform_2(%arg0: i32) -> (i32, i32) {
    %c0_i32 = arith.constant 0 : i32
    %c0_i32_0 = arith.constant 0 : i32
    %c0_i32_1 = arith.constant 0 : i32
    return %c0_i32, %c0_i32_0 : i32, i32
  }
  func.func @transform_3(%arg0: i32) -> (i32, i32) {
    %c0_i32 = arith.constant 0 : i32
    %c0_i32_0 = arith.constant 0 : i32
    %c0_i32_1 = arith.constant 0 : i32
    return %c0_i32, %c0_i32_0 : i32, i32
  }
  func.func @transform_4(%arg0: i32) -> (i32, i32) {
    %c0_i32 = arith.constant 0 : i32
    %c0_i32_0 = arith.constant 0 : i32
    %c0_i32_1 = arith.constant 0 : i32
    return %c0_i32, %c0_i32_0 : i32, i32
  }
  func.func @transform_5(%arg0: i32) -> (i32, i32) {
    %c0_i32 = arith.constant 0 : i32
    %c0_i32_0 = arith.constant 0 : i32
    %c0_i32_1 = arith.constant 0 : i32
    return %c0_i32, %c0_i32_0 : i32, i32
  }
  func.func @transform_6(%arg0: i32) -> (i32, i32) {
    %c0_i32 = arith.constant 0 : i32
    %c0_i32_0 = arith.constant 0 : i32
    %c0_i32_1 = arith.constant 0 : i32
    return %c0_i32, %c0_i32_0 : i32, i32
  }
  func.func @transform_7(%arg0: i32) -> (i32, i32) {
    %c0_i32 = arith.constant 0 : i32
    %c0_i32_0 = arith.constant 0 : i32
    return %c0_i32, %arg0 : i32, i32
  }
}

</mosaic_0001>

<llo_original>
// kernel: tpu_custom_call.1
$region0: #{tpu_custom_call.1}
  #allocation0 [shape = 'u32[]', space=smem, size = 0x4, offset = 0x4, fixed_abs, tag = 'smem constant byte address 0x4 - core index']
  #allocation1 [shape = 'u32[144,128]{1,0:T(1,128)}', space=vmem, size = 0x12000, scoped, tag = 'internal scratch']
  #allocation2 [shape = 'f32[1,1]{1,0:T(1,128)S(1)}', space=vmem, size = 0x200, scoped, tag = 'scoped memory for tpu_custom_call.1']
  %s0 = inlined_call_operand.vmem [shape: f32[256,4], index: 0, kind: input, shape index: {}]
  %s1 = inlined_call_operand.vmem [shape: f32[32,4], index: 1, kind: input, shape index: {}]
  %s2 = inlined_call_operand.vmem [shape: f32[32,1], index: 2, kind: input, shape index: {}]
  %s3 = inlined_call_operand.vmem [shape: f32[32,32], index: 3, kind: input, shape index: {}]
  %s4 = inlined_call_operand.vmem [shape: f32[32,1], index: 4, kind: input, shape index: {}]
  %s5 = inlined_call_operand.vmem [shape: f32[1,32], index: 5, kind: input, shape index: {}]
  %s6 = inlined_call_operand.<no memory space> [shape: f32[1,1], index: 6, kind: input, shape index: {}]
  %s7 = inlined_call_operand.hbm [shape: f32[1,256], index: 7, kind: output, shape index: {}]
  %s8 = sld [smem:[#allocation0]]
  $region61: #{tpu_custom_call.1} parent=0
    _
  %s10 = ssub.s32 1, %s8
  %s11 = scalar_select 0, %s10, %s8
  %v12 = vstv %s6
  %13 = vst [vmem:[#allocation2] sm:$0x1] %v12
  $region1: #{tpu_custom_call.1} parent=0
    #allocation3 [shape = 'u8[1024]{0}', space=vmem, size = 0x400, scoped, tag = 'output window, operand 0']
    #allocation4 [shape = 's32[2]{0}', space=sflag, size = 0x8, scoped, tag = 'scoped memory for tpu_custom_call.1']
    %14 = vsyncpa [#allocation4], 0
    %s15 = scalar_lea.sflag [#allocation4], 1
    %16 = vsyncpa %s15, 0
    loop: start=0, step=1, limit=4
    $region2: #{tpu_custom_call.1} parent=1 // loop_pre_header
      _
    $region3: #{tpu_custom_call.1} parent=1 // loop_header
      %s18 = sphi 0, %s22
      %p19 = scmp.ge.s32.totalorder %s18, 4
      %s28 = sphi 0, %s30
      %s31 = sphi 0, %s28
      %s32 = sphi 0, %s31
      %s48 = sphi 0, %s32
      %s52 = sphi 0, %s52
      %s54 = sphi 0, %s52
      %s55 = sphi 0, %s54
      %s69 = sphi 0, %s55
      %s73 = sphi 0, %s73
      %s75 = sphi 0, %s73
      %s76 = sphi 0, %s75
      %s90 = sphi 0, %s76
      %s94 = sphi 0, %s94
      %s96 = sphi 0, %s94
      %s97 = sphi 0, %s96
      %s111 = sphi 0, %s97
      %s115 = sphi 0, %s115
      %s117 = sphi 0, %s115
      %s118 = sphi 0, %s117
      %s132 = sphi 0, %s118
      %s136 = sphi 0, %s136
      %s138 = sphi 0, %s136
      %s139 = sphi 0, %s138
      %s153 = sphi 0, %s139
      %s157 = sphi 0, %s157
      %s159 = sphi 0, %s157
      %s160 = sphi 0, %s159
      %s174 = sphi 0, %s160
      %s180 = sphi 0, %s182
      %s183 = sphi 0, %s180
      %s184 = sphi 0, %s183
      %s200 = sphi 0, %s184
    $region4: #{tpu_custom_call.1} parent=1 // loop_header_branch
      %21 = sbr.rel (%p19) target = $region8
    $region5: #{tpu_custom_call.1} parent=1 // loop_body
      %s23 = ssub.s32 %s18, 1
      %s24 = ssub.s32 %s18, 2
      %s25 = sadd.s32 %s18, 1
      %s26 = ssub.s32 %s18, %s25
      %p27 = scmp.eq.s32.totalorder %s26, 0
      %s29 = sadd.s32 %s28, 1
      %s30 = scalar_select %p27, %s28, %s29
      %p33 = pneg %p27
      %p34 = scmp.eq.s32.totalorder %s18, 1
      %p35 = por %p33, %p34
      %p36 = scmp.ne.s32.totalorder %s28, %s31
      %p37 = scmp.eq.s32.totalorder %s18, 0
      %p38 = por %p36, %p37
      %p39 = scmp.ne.s32.totalorder %s28, %s31
      %p40 = scmp.eq.s32.totalorder %s23, 1
      %p41 = por %p39, %p40
      %p42 = scmp.ne.s32.totalorder %s31, %s32
      %p43 = scmp.eq.s32.totalorder %s23, 0
      %p44 = por %p42, %p43
      %p45 = scmp.ne.s32.totalorder %s31, %s32
      %p46 = scmp.eq.s32.totalorder %s24, 1
      %p47 = por %p45, %p46
      %p49 = scmp.ne.s32.totalorder %s32, %s48
      %p50 = scmp.eq.s32.totalorder %s24, 0
      %p51 = por %p49, %p50
      %s53 = sadd.s32 %s52, 1
      %p56 = scmp.eq.s32.totalorder %s18, 1
      %p57 = scmp.ne.s32.totalorder %s52, %s54
      %p58 = scmp.eq.s32.totalorder %s18, 0
      %p59 = por %p57, %p58
      %p60 = scmp.ne.s32.totalorder %s52, %s54
      %p61 = scmp.eq.s32.totalorder %s23, 1
      %p62 = por %p60, %p61
      %p63 = scmp.ne.s32.totalorder %s54, %s55
      %p64 = scmp.eq.s32.totalorder %s23, 0
      %p65 = por %p63, %p64
      %p66 = scmp.ne.s32.totalorder %s54, %s55
      %p67 = scmp.eq.s32.totalorder %s24, 1
      %p68 = por %p66, %p67
      %p70 = scmp.ne.s32.totalorder %s55, %s69
      %p71 = scmp.eq.s32.totalorder %s24, 0
      %p72 = por %p70, %p71
      %s74 = sadd.s32 %s73, 1
      %p77 = scmp.eq.s32.totalorder %s18, 1
      %p78 = scmp.ne.s32.totalorder %s73, %s75
      %p79 = scmp.eq.s32.totalorder %s18, 0
      %p80 = por %p78, %p79
      %p81 = scmp.ne.s32.totalorder %s73, %s75
      %p82 = scmp.eq.s32.totalorder %s23, 1
      %p83 = por %p81, %p82
      %p84 = scmp.ne.s32.totalorder %s75, %s76
      %p85 = scmp.eq.s32.totalorder %s23, 0
      %p86 = por %p84, %p85
      %p87 = scmp.ne.s32.totalorder %s75, %s76
      %p88 = scmp.eq.s32.totalorder %s24, 1
      %p89 = por %p87, %p88
      %p91 = scmp.ne.s32.totalorder %s76, %s90
      %p92 = scmp.eq.s32.totalorder %s24, 0
      %p93 = por %p91, %p92
      %s95 = sadd.s32 %s94, 1
      %p98 = scmp.eq.s32.totalorder %s18, 1
      %p99 = scmp.ne.s32.totalorder %s94, %s96
      %p100 = scmp.eq.s32.totalorder %s18, 0
      %p101 = por %p99, %p100
      %p102 = scmp.ne.s32.totalorder %s94, %s96
      %p103 = scmp.eq.s32.totalorder %s23, 1
      %p104 = por %p102, %p103
      %p105 = scmp.ne.s32.totalorder %s96, %s97
      %p106 = scmp.eq.s32.totalorder %s23, 0
      %p107 = por %p105, %p106
      %p108 = scmp.ne.s32.totalorder %s96, %s97
      %p109 = scmp.eq.s32.totalorder %s24, 1
      %p110 = por %p108, %p109
      %p112 = scmp.ne.s32.totalorder %s97, %s111
      %p113 = scmp.eq.s32.totalorder %s24, 0
      %p114 = por %p112, %p113
      %s116 = sadd.s32 %s115, 1
      %p119 = scmp.eq.s32.totalorder %s18, 1
      %p120 = scmp.ne.s32.totalorder %s115, %s117
      %p121 = scmp.eq.s32.totalorder %s18, 0
      %p122 = por %p120, %p121
      %p123 = scmp.ne.s32.totalorder %s115, %s117
      %p124 = scmp.eq.s32.totalorder %s23, 1
      %p125 = por %p123, %p124
      %p126 = scmp.ne.s32.totalorder %s117, %s118
      %p127 = scmp.eq.s32.totalorder %s23, 0
      %p128 = por %p126, %p127
      %p129 = scmp.ne.s32.totalorder %s117, %s118
      %p130 = scmp.eq.s32.totalorder %s24, 1
      %p131 = por %p129, %p130
      %p133 = scmp.ne.s32.totalorder %s118, %s132
      %p134 = scmp.eq.s32.totalorder %s24, 0
      %p135 = por %p133, %p134
      %s137 = sadd.s32 %s136, 1
      %p140 = scmp.eq.s32.totalorder %s18, 1
      %p141 = scmp.ne.s32.totalorder %s136, %s138
      %p142 = scmp.eq.s32.totalorder %s18, 0
      %p143 = por %p141, %p142
      %p144 = scmp.ne.s32.totalorder %s136, %s138
      %p145 = scmp.eq.s32.totalorder %s23, 1
      %p146 = por %p144, %p145
      %p147 = scmp.ne.s32.totalorder %s138, %s139
      %p148 = scmp.eq.s32.totalorder %s23, 0
      %p149 = por %p147, %p148
      %p150 = scmp.ne.s32.totalorder %s138, %s139
      %p151 = scmp.eq.s32.totalorder %s24, 1
      %p152 = por %p150, %p151
      %p154 = scmp.ne.s32.totalorder %s139, %s153
      %p155 = scmp.eq.s32.totalorder %s24, 0
      %p156 = por %p154, %p155
      %s158 = sadd.s32 %s157, 1
      %p161 = scmp.eq.s32.totalorder %s18, 1
      %p162 = scmp.ne.s32.totalorder %s157, %s159
      %p163 = scmp.eq.s32.totalorder %s18, 0
      %p164 = por %p162, %p163
      %p165 = scmp.ne.s32.totalorder %s157, %s159
      %p166 = scmp.eq.s32.totalorder %s23, 1
      %p167 = por %p165, %p166
      %p168 = scmp.ne.s32.totalorder %s159, %s160
      %p169 = scmp.eq.s32.totalorder %s23, 0
      %p170 = por %p168, %p169
      %p171 = scmp.ne.s32.totalorder %s159, %s160
      %p172 = scmp.eq.s32.totalorder %s24, 1
      %p173 = por %p171, %p172
      %p175 = scmp.ne.s32.totalorder %s160, %s174
      %p176 = scmp.eq.s32.totalorder %s24, 0
      %p177 = por %p175, %p176
      %s178 = ssub.s32 %s18, %s25
      %p179 = scmp.eq.s32.totalorder %s178, 0
      %s181 = sadd.s32 %s180, 1
      %s182 = scalar_select %p179, %s180, %s181
      %p185 = pneg %p179
      %p186 = scmp.eq.s32.totalorder %s18, 1
      %p187 = por %p185, %p186
      %p188 = scmp.ne.s32.totalorder %s180, %s183
      %p189 = scmp.eq.s32.totalorder %s18, 0
      %p190 = por %p188, %p189
      %p191 = scmp.ne.s32.totalorder %s180, %s183
      %p192 = scmp.eq.s32.totalorder %s23, 1
      %p193 = por %p191, %p192
      %p194 = scmp.ne.s32.totalorder %s183, %s184
      %p195 = scmp.eq.s32.totalorder %s23, 0
      %p196 = por %p194, %p195
      %p197 = scmp.ne.s32.totalorder %s183, %s184
      %p198 = scmp.eq.s32.totalorder %s24, 1
      %p199 = por %p197, %p198
      %p201 = scmp.ne.s32.totalorder %s184, %s200
      %p202 = scmp.eq.s32.totalorder %s24, 0
      %p203 = por %p201, %p202
      %p204 = scmp.le.s32.totalorder 1, %s18
      %p205 = scmp.lt.s32.totalorder %s18, 3
      %p206 = pnand %p204, %p205
      %p207 = pneg %p206
      // Predicated region
      $region9: #{tpu_custom_call.1} parent=5 // pred_check
        _
      $region10: #{tpu_custom_call.1} parent=5 // pred_check_branch
        %209 = sbr.rel (%p206) target = $region12
      $region11: #{tpu_custom_call.1} parent=5 // pred_region
        %s210 = ssub.s32 %s18, 1
        // Predicated region
        $region13: #{tpu_custom_call.1} parent=11 // pred_check
          %p211 = pneg %p65
        $region14: #{tpu_custom_call.1} parent=11 // pred_check_branch
          %213 = sbr.rel (%p211) target = $region16
        $region15: #{tpu_custom_call.1} parent=11 // pred_region
          _
        $region16: #{tpu_custom_call.1} parent=11 // pred_fallthru
          _
        // Predicated region
        $region17: #{tpu_custom_call.1} parent=11 // pred_check
          %p214 = pneg %p86
        $region18: #{tpu_custom_call.1} parent=11 // pred_check_branch
          %216 = sbr.rel (%p214) target = $region20
        $region19: #{tpu_custom_call.1} parent=11 // pred_region
          _
        $region20: #{tpu_custom_call.1} parent=11 // pred_fallthru
          _
        // Predicated region
        $region21: #{tpu_custom_call.1} parent=11 // pred_check
          %p217 = pneg %p107
        $region22: #{tpu_custom_call.1} parent=11 // pred_check_branch
          %219 = sbr.rel (%p217) target = $region24
        $region23: #{tpu_custom_call.1} parent=11 // pred_region
          _
        $region24: #{tpu_custom_call.1} parent=11 // pred_fallthru
          _
        // Predicated region
        $region25: #{tpu_custom_call.1} parent=11 // pred_check
          %p220 = pneg %p128
        $region26: #{tpu_custom_call.1} parent=11 // pred_check_branch
          %222 = sbr.rel (%p220) target = $region28
        $region27: #{tpu_custom_call.1} parent=11 // pred_region
          _
        $region28: #{tpu_custom_call.1} parent=11 // pred_fallthru
          _
        // Predicated region
        $region29: #{tpu_custom_call.1} parent=11 // pred_check
          %p223 = pneg %p149
        $region30: #{tpu_custom_call.1} parent=11 // pred_check_branch
          %225 = sbr.rel (%p223) target = $region32
        $region31: #{tpu_custom_call.1} parent=11 // pred_region
          _
        $region32: #{tpu_custom_call.1} parent=11 // pred_fallthru
          _
        // Predicated region
        $region33: #{tpu_custom_call.1} parent=11 // pred_check
          %p226 = pneg %p170
        $region34: #{tpu_custom_call.1} parent=11 // pred_check_branch
          %228 = sbr.rel (%p226) target = $region36
        $region35: #{tpu_custom_call.1} parent=11 // pred_region
          _
        $region36: #{tpu_custom_call.1} parent=11 // pred_fallthru
          _
      $region12: #{tpu_custom_call.1} parent=5 // pred_fallthru
        _
      %p229 = scmp.lt.s32.totalorder %s18, 2
      // Predicated region
      $region37: #{tpu_custom_call.1} parent=5 // pred_check
        %p230 = pneg %p229
      $region38: #{tpu_custom_call.1} parent=5 // pred_check_branch
        %232 = sbr.rel (%p230) target = $region40
      $region39: #{tpu_custom_call.1} parent=5 // pred_region
        // Predicated region
        $region41: #{tpu_custom_call.1} parent=39 // pred_check
          %p233 = pneg %p38
        $region42: #{tpu_custom_call.1} parent=39 // pred_check_branch
          %235 = sbr.rel (%p233) target = $region44
        $region43: #{tpu_custom_call.1} parent=39 // pred_region
          %s236 = smul.u32 16, %s18
          %p237 = scmp.lt.s32.totalorder %s236, 31
          %s238 = scalar_select %p237, %s236, 31
          %s239 = smul.addr %s238, 8
          %s240 = scalar_lea.vmem %s0, %s239
          %s241 = smul.u32 16, %s18
        $region44: #{tpu_custom_call.1} parent=39 // pred_fallthru
          _
      $region40: #{tpu_custom_call.1} parent=5 // pred_fallthru
        _
      %p242 = scmp.le.s32.totalorder 1, %s18
      %p243 = scmp.lt.s32.totalorder %s18, 3
      %p244 = pnand %p242, %p243
      %p245 = pneg %p244
      // Predicated region
      $region45: #{tpu_custom_call.1} parent=5 // pred_check
        _
      $region46: #{tpu_custom_call.1} parent=5 // pred_check_branch
        %247 = sbr.rel (%p244) target = $region48
      $region47: #{tpu_custom_call.1} parent=5 // pred_region
        %s248 = ssub.s32 %s18, 1
        %s249 = smul.u32 16, %s23
        %p250 = scmp.lt.s32.totalorder %s249, 31
        %s251 = scalar_select %p250, %s249, 31
        %s252 = smul.addr %s251, 8
        %s253 = scalar_lea.vmem %s0, %s252
        %p254 = pneg %p44
        %p255 = pneg %p41
        %p256 = pneg %p65
        %p257 = pneg %p62
        %p258 = pneg %p86
        %p259 = pneg %p83
        %p260 = pneg %p107
        %p261 = pneg %p104
        %p262 = pneg %p128
        %p263 = pneg %p125
        %p264 = pneg %p149
        %p265 = pneg %p146
        %p266 = pneg %p170
        %p267 = pneg %p167
        %p268 = pneg %p196
        %p269 = pneg %p193
        %s270 = sand.u32 %s183, 1
        %s271 = scalar_lea.sflag [#allocation4], %s270
        %s272 = sand.u32 %s183, 1
        %s273 = scalar_lea.vmem [#allocation3], %s272
        %s274 = smul.u32 16, %s23
        %p275 = scmp.lt.s32.totalorder %s274, 31
        %s276 = scalar_select %p275, %s274, 31
        %s277 = smul.addr %s276, 8
        %s278 = scalar_lea.vmem %s0, %s277
        %s279 = smul.u32 16, %s23
        %v280 = vld [vmem:[%s278] sm:$0xff]
        %v281 = vld [vmem:[%s278 + $0x8] sm:$0xff]
        %v282 = vld [vmem:[%s278 + $0x10] sm:$0xff]
        %v283 = vld [vmem:[%s278 + $0x18] sm:$0xff]
        %v284 = vld [vmem:[%s278 + $0x20] sm:$0xff]
        %v285 = vld [vmem:[%s278 + $0x28] sm:$0xff]
        %v286 = vld [vmem:[%s278 + $0x30] sm:$0xff]
        %v287 = vld [vmem:[%s278 + $0x38] sm:$0xff]
        %v288 = vld [vmem:[%s278 + $0x40] sm:$0xff]
        %v289 = vld [vmem:[%s278 + $0x48] sm:$0xff]
        %v290 = vld [vmem:[%s278 + $0x50] sm:$0xff]
        %v291 = vld [vmem:[%s278 + $0x58] sm:$0xff]
        %v292 = vld [vmem:[%s278 + $0x60] sm:$0xff]
        %v293 = vld [vmem:[%s278 + $0x68] sm:$0xff]
        %v294 = vld [vmem:[%s278 + $0x70] sm:$0xff]
        %v295 = vld [vmem:[%s278 + $0x78] sm:$0xff]
        %v296 = vld [vmem:[%s1] sm:$0xff]
        %v297 = vld [vmem:[%s1 + $0x8] sm:$0xff]
        %v298 = vld [vmem:[%s1 + $0x10] sm:$0xff]
        %v299 = vld [vmem:[%s1 + $0x18] sm:$0xff]
        %v300 = vld [vmem:[%s2] sm:$0xff]
        %v301 = vld [vmem:[%s2 + $0x8] sm:$0xff]
        %v302 = vld [vmem:[%s2 + $0x10] sm:$0xff]
        %v303 = vld [vmem:[%s2 + $0x18] sm:$0xff]
        %305 = vset.pattern.permute.xlu0 0
        %306 = vperm.xlu0 %305, %v300
        %v307 = vpop.permute.xlu0 %306
        %310 = vset.pattern.permute.xlu0 0
        %311 = vperm.xlu0 %310, %v301
        %v312 = vpop.permute.xlu0 %311
        %315 = vset.pattern.permute.xlu0 0
        %316 = vperm.xlu0 %315, %v302
        %v317 = vpop.permute.xlu0 %316
        %320 = vset.pattern.permute.xlu0 0
        %321 = vperm.xlu0 %320, %v303
        %v322 = vpop.permute.xlu0 %321
        %vm324 = vcmask 31744
        %v326 = vsel %vm324, %v296, 0
        %v329 = vsel %vm324, %v297, 0
        %v332 = vsel %vm324, %v298, 0
        %v335 = vsel %vm324, %v299, 0
        %v338 = vsel %vm324, %v280, 0
        %v341 = vsel %vm324, %v281, 0
        %v344 = vsel %vm324, %v282, 0
        %v347 = vsel %vm324, %v283, 0
        %v350 = vsel %vm324, %v284, 0
        %v353 = vsel %vm324, %v285, 0
        %v356 = vsel %vm324, %v286, 0
        %v359 = vsel %vm324, %v287, 0
        %v362 = vsel %vm324, %v288, 0
        %v365 = vsel %vm324, %v289, 0
        %v368 = vsel %vm324, %v290, 0
        %v371 = vsel %vm324, %v291, 0
        %v374 = vsel %vm324, %v292, 0
        %v377 = vsel %vm324, %v293, 0
        %v380 = vsel %vm324, %v294, 0
        %v383 = vsel %vm324, %v295, 0
        %385 = vmatprep.subr.mxu0 0.0
        %386 = vmatpush1.xpose.msra.mxu0 %v338
        %387 = vmatprep.subr.mxu0 0.0
        %388 = vmatpush1.xpose.msra.mxu0 %v341
        %389 = vmatprep.subr.mxu0 0.0
        %390 = vmatpush1.xpose.msra.mxu0 %v344
        %391 = vmatprep.subr.mxu0 0.0
        %392 = vmatpush1.xpose.msra.mxu0 %v347
        %393 = vmatprep.subr.mxu0 0.0
        %394 = vmatpush1.xpose.msra.mxu0 %v350
        %395 = vmatprep.subr.mxu0 0.0
        %396 = vmatpush1.xpose.msra.mxu0 %v353
        %397 = vmatprep.subr.mxu0 0.0
        %398 = vmatpush1.xpose.msra.mxu0 %v356
        %399 = vmatprep.subr.mxu0 0.0
        %400 = vmatpush1.xpose.msra.mxu0 %v359
        %401 = vmatprep.subr.mxu0 0.0
        %402 = vmatpush1.xpose.msra.mxu0 %v362
        %403 = vmatprep.subr.mxu0 0.0
        %404 = vmatpush1.xpose.msra.mxu0 %v365
        %405 = vmatprep.subr.mxu0 0.0
        %406 = vmatpush1.xpose.msra.mxu0 %v368
        %407 = vmatprep.subr.mxu0 0.0
        %408 = vmatpush1.xpose.msra.mxu0 %v371
        %409 = vmatprep.subr.mxu0 0.0
        %410 = vmatpush1.xpose.msra.mxu0 %v374
        %411 = vmatprep.subr.mxu0 0.0
        %412 = vmatpush1.xpose.msra.mxu0 %v377
        %413 = vmatprep.subr.mxu0 0.0
        %414 = vmatpush1.xpose.msra.mxu0 %v380
        %415 = vmatprep.subr.mxu0 0.0
        %416 = vmatpush1.xpose.msra.mxu0 %v383
        %417 = vmatprep.subr.mxu0 0.0
        %418 = vmatpush1.xpose.msra.mxu0 0.0
        %419 = vmatprep.subr.mxu0 0.0
        %420 = vmatpush1.xpose.msra.mxu0 0.0
        %421 = vmatprep.subr.mxu0 0.0
        %422 = vmatpush1.xpose.msra.mxu0 0.0
        %423 = vmatprep.subr.mxu0 0.0
        %424 = vmatpush1.xpose.msra.mxu0 0.0
        %425 = vmatprep.subr.mxu0 0.0
        %426 = vmatpush1.xpose.msra.mxu0 0.0
        %427 = vmatprep.subr.mxu0 0.0
        %428 = vmatpush1.xpose.msra.mxu0 0.0
        %429 = vmatprep.subr.mxu0 0.0
        %430 = vmatpush1.xpose.msra.mxu0 0.0
        %431 = vmatprep.subr.mxu0 0.0
        %432 = vmatpush1.xpose.msra.mxu0 0.0
        %433 = vmatprep.subr.mxu0 0.0
        %434 = vmatpush1.xpose.msra.mxu0 0.0
        %435 = vmatprep.subr.mxu0 0.0
        %436 = vmatpush1.xpose.msra.mxu0 0.0
        %437 = vmatprep.subr.mxu0 0.0
        %438 = vmatpush1.xpose.msra.mxu0 0.0
        %439 = vmatprep.subr.mxu0 0.0
        %440 = vmatpush1.xpose.msra.mxu0 0.0
        %441 = vmatprep.subr.mxu0 0.0
        %442 = vmatpush1.xpose.msra.mxu0 0.0
        %443 = vmatprep.subr.mxu0 0.0
        %444 = vmatpush1.xpose.msra.mxu0 0.0
        %445 = vmatprep.subr.mxu0 0.0
        %446 = vmatpush1.xpose.msra.mxu0 0.0
        %447 = vmatprep.subr.mxu0 0.0
        %448 = vmatpush1.xpose.msra.mxu0 0.0
        %449 = vmatprep.mubr.f32.mxu0 0.0
        %450 = vmatmul.mubr.f32.gmra.mrb[0].mxu0 %v326
        %v451 = vpop.f32.mrb[0].mxu0
        %v452 = vadd.f32 %v307, %v451
        %v453 = vpop.f32.mrb[0].mxu0
        %454 = vmatprep.mubr.f32.mxu0 0.0
        %455 = vmatmul.mubr.f32.gmra.mrb[0].mxu0 %v329
        %v456 = vpop.f32.mrb[0].mxu0
        %v457 = vadd.f32 %v312, %v456
        %v458 = vpop.f32.mrb[0].mxu0
        %459 = vmatprep.mubr.f32.mxu0 0.0
        %460 = vmatmul.mubr.f32.gmra.mrb[0].mxu0 %v332
        %v461 = vpop.f32.mrb[0].mxu0
        %v462 = vadd.f32 %v317, %v461
        %v463 = vpop.f32.mrb[0].mxu0
        %464 = vmatprep.mubr.f32.mxu0 0.0
        %465 = vmatmul.mubr.f32.gmra.mrb[0].mxu0 %v335
        %v466 = vpop.f32.mrb[0].mxu0
        %v467 = vadd.f32 %v322, %v466
        %v468 = vpop.f32.mrb[0].mxu0
        %469 = vdwg.mxu0
        %v470 = vtanh.pop %v452
        %v471 = vtanh.pop %v457
        %v472 = vtanh.pop %v462
        %v473 = vtanh.pop %v467
        %v474 = vld [vmem:[%s3] sm:$0xff]
        %v475 = vld [vmem:[%s3 + $0x8] sm:$0xff]
        %v476 = vld [vmem:[%s3 + $0x10] sm:$0xff]
        %v477 = vld [vmem:[%s3 + $0x18] sm:$0xff]
        %v478 = vld [vmem:[%s4] sm:$0xff]
        %v479 = vld [vmem:[%s4 + $0x8] sm:$0xff]
        %v480 = vld [vmem:[%s4 + $0x10] sm:$0xff]
        %v481 = vld [vmem:[%s4 + $0x18] sm:$0xff]
        %483 = vset.pattern.permute.xlu0 0
        %484 = vperm.xlu0 %483, %v478
        %v485 = vpop.permute.xlu0 %484
        %488 = vset.pattern.permute.xlu0 0
        %489 = vperm.xlu0 %488, %v479
        %v490 = vpop.permute.xlu0 %489
        %493 = vset.pattern.permute.xlu0 0
        %494 = vperm.xlu0 %493, %v480
        %v495 = vpop.permute.xlu0 %494
        %498 = vset.pattern.permute.xlu0 0
        %499 = vperm.xlu0 %498, %v481
        %v500 = vpop.permute.xlu0 %499
        %vm502 = vcmask 261120
        %v504 = vsel %vm502, %v474, 0
        %v507 = vsel %vm502, %v475, 0
        %v510 = vsel %vm502, %v476, 0
        %v513 = vsel %vm502, %v477, 0
        %515 = vmatprep.subr.mxu0 0.0
        %516 = vmatpush1.msra.mxu0 %v470
        %517 = vmatprep.subr.mxu0 0.0
        %518 = vmatpush1.msra.mxu0 %v471
        %519 = vmatprep.subr.mxu0 0.0
        %520 = vmatpush1.msra.mxu0 %v472
        %521 = vmatprep.subr.mxu0 0.0
        %522 = vmatpush1.msra.mxu0 %v473
        %523 = vmatprep.subr.mxu0 0.0
        %524 = vmatpush1.msra.mxu0 0.0
        %525 = vmatprep.subr.mxu0 0.0
        %526 = vmatpush1.msra.mxu0 0.0
        %527 = vmatprep.subr.mxu0 0.0
        %528 = vmatpush1.msra.mxu0 0.0
        %529 = vmatprep.subr.mxu0 0.0
        %530 = vmatpush1.msra.mxu0 0.0
        %531 = vmatprep.subr.mxu0 0.0
        %532 = vmatpush1.msra.mxu0 0.0
        %533 = vmatprep.subr.mxu0 0.0
        %534 = vmatpush1.msra.mxu0 0.0
        %535 = vmatprep.subr.mxu0 0.0
        %536 = vmatpush1.msra.mxu0 0.0
        %537 = vmatprep.subr.mxu0 0.0
        %538 = vmatpush1.msra.mxu0 0.0
        %539 = vmatprep.subr.mxu0 0.0
        %540 = vmatpush1.msra.mxu0 0.0
        %541 = vmatprep.subr.mxu0 0.0
        %542 = vmatpush1.msra.mxu0 0.0
        %543 = vmatprep.subr.mxu0 0.0
        %544 = vmatpush1.msra.mxu0 0.0
        %545 = vmatprep.subr.mxu0 0.0
        %546 = vmatpush1.msra.mxu0 0.0
        %547 = vmatprep.subr.mxu0 0.0
        %548 = vmatpush1.msra.mxu0 0.0
        %549 = vmatprep.subr.mxu0 0.0
        %550 = vmatpush1.msra.mxu0 0.0
        %551 = vmatprep.subr.mxu0 0.0
        %552 = vmatpush1.msra.mxu0 0.0
        %553 = vmatprep.subr.mxu0 0.0
        %554 = vmatpush1.msra.mxu0 0.0
        %555 = vmatprep.subr.mxu0 0.0
        %556 = vmatpush1.msra.mxu0 0.0
        %557 = vmatprep.subr.mxu0 0.0
        %558 = vmatpush1.msra.mxu0 0.0
        %559 = vmatprep.subr.mxu0 0.0
        %560 = vmatpush1.msra.mxu0 0.0
        %561 = vmatprep.subr.mxu0 0.0
        %562 = vmatpush1.msra.mxu0 0.0
        %563 = vmatprep.subr.mxu0 0.0
        %564 = vmatpush1.msra.mxu0 0.0
        %565 = vmatprep.subr.mxu0 0.0
        %566 = vmatpush1.msra.mxu0 0.0
        %567 = vmatprep.subr.mxu0 0.0
        %568 = vmatpush1.msra.mxu0 0.0
        %569 = vmatprep.subr.mxu0 0.0
        %570 = vmatpush1.msra.mxu0 0.0
        %571 = vmatprep.subr.mxu0 0.0
        %572 = vmatpush1.msra.mxu0 0.0
        %573 = vmatprep.subr.mxu0 0.0
        %574 = vmatpush1.msra.mxu0 0.0
        %575 = vmatprep.subr.mxu0 0.0
        %576 = vmatpush1.msra.mxu0 0.0
        %577 = vmatprep.subr.mxu0 0.0
        %578 = vmatpush1.msra.mxu0 0.0
        %579 = vmatprep.mubr.f32.mxu0 0.0
        %580 = vmatmul.mubr.f32.gmra.mrb[0].mxu0 %v504
        %v581 = vpop.f32.mrb[0].mxu0
        %v582 = vadd.f32 %v485, %v581
        %v583 = vpop.f32.mrb[0].mxu0
        %584 = vmatprep.mubr.f32.mxu0 0.0
        %585 = vmatmul.mubr.f32.gmra.mrb[0].mxu0 %v507
        %v586 = vpop.f32.mrb[0].mxu0
        %v587 = vadd.f32 %v490, %v586
        %v588 = vpop.f32.mrb[0].mxu0
        %589 = vmatprep.mubr.f32.mxu0 0.0
        %590 = vmatmul.mubr.f32.gmra.mrb[0].mxu0 %v510
        %v591 = vpop.f32.mrb[0].mxu0
        %v592 = vadd.f32 %v495, %v591
        %v593 = vpop.f32.mrb[0].mxu0
        %594 = vmatprep.mubr.f32.mxu0 0.0
        %595 = vmatmul.mubr.f32.gmra.mrb[0].mxu0 %v513
        %v596 = vpop.f32.mrb[0].mxu0
        %v597 = vadd.f32 %v500, %v596
        %v598 = vpop.f32.mrb[0].mxu0
        %599 = vdwg.mxu0
        %v600 = vtanh.pop %v582
        %v601 = vtanh.pop %v587
        %v602 = vtanh.pop %v592
        %v603 = vtanh.pop %v597
        %v604 = vld [vmem:[%s5] sm:$0x1]
        %v605 = vld [vmem:[#allocation2] sm:$0x1]
        %607 = vset.pattern.permute.xlu0 0
        %608 = vperm.xlu0 %607, %v605
        %v609 = vpop.permute.xlu0 %608
        %v611 = vlaneseq
        %v612 = vshrl.u32 %v611, 7
        %v613 = vsub.s32 0, %v612
        %v614 = vrot.slane %v609, %v613
        %v616 = vsel %vm502, %v604, 0
        %618 = vmatprep.subr.mxu0 0.0
        %619 = vmatpush1.msra.mxu0 %v600
        %620 = vmatprep.subr.mxu0 0.0
        %621 = vmatpush1.msra.mxu0 %v601
        %622 = vmatprep.subr.mxu0 0.0
        %623 = vmatpush1.msra.mxu0 %v602
        %624 = vmatprep.subr.mxu0 0.0
        %625 = vmatpush1.msra.mxu0 %v603
        %626 = vmatprep.subr.mxu0 0.0
        %627 = vmatpush1.msra.mxu0 0.0
        %628 = vmatprep.subr.mxu0 0.0
        %629 = vmatpush1.msra.mxu0 0.0
        %630 = vmatprep.subr.mxu0 0.0
        %631 = vmatpush1.msra.mxu0 0.0
        %632 = vmatprep.subr.mxu0 0.0
        %633 = vmatpush1.msra.mxu0 0.0
        %634 = vmatprep.subr.mxu0 0.0
        %635 = vmatpush1.msra.mxu0 0.0
        %636 = vmatprep.subr.mxu0 0.0
        %637 = vmatpush1.msra.mxu0 0.0
        %638 = vmatprep.subr.mxu0 0.0
        %639 = vmatpush1.msra.mxu0 0.0
        %640 = vmatprep.subr.mxu0 0.0
        %641 = vmatpush1.msra.mxu0 0.0
        %642 = vmatprep.subr.mxu0 0.0
        %643 = vmatpush1.msra.mxu0 0.0
        %644 = vmatprep.subr.mxu0 0.0
        %645 = vmatpush1.msra.mxu0 0.0
        %646 = vmatprep.subr.mxu0 0.0
        %647 = vmatpush1.msra.mxu0 0.0
        %648 = vmatprep.subr.mxu0 0.0
        %649 = vmatpush1.msra.mxu0 0.0
        %650 = vmatprep.subr.mxu0 0.0
        %651 = vmatpush1.msra.mxu0 0.0
        %652 = vmatprep.subr.mxu0 0.0
        %653 = vmatpush1.msra.mxu0 0.0
        %654 = vmatprep.subr.mxu0 0.0
        %655 = vmatpush1.msra.mxu0 0.0
        %656 = vmatprep.subr.mxu0 0.0
        %657 = vmatpush1.msra.mxu0 0.0
        %658 = vmatprep.subr.mxu0 0.0
        %659 = vmatpush1.msra.mxu0 0.0
        %660 = vmatprep.subr.mxu0 0.0
        %661 = vmatpush1.msra.mxu0 0.0
        %662 = vmatprep.subr.mxu0 0.0
        %663 = vmatpush1.msra.mxu0 0.0
        %664 = vmatprep.subr.mxu0 0.0
        %665 = vmatpush1.msra.mxu0 0.0
        %666 = vmatprep.subr.mxu0 0.0
        %667 = vmatpush1.msra.mxu0 0.0
        %668 = vmatprep.subr.mxu0 0.0
        %669 = vmatpush1.msra.mxu0 0.0
        %670 = vmatprep.subr.mxu0 0.0
        %671 = vmatpush1.msra.mxu0 0.0
        %672 = vmatprep.subr.mxu0 0.0
        %673 = vmatpush1.msra.mxu0 0.0
        %674 = vmatprep.subr.mxu0 0.0
        %675 = vmatpush1.msra.mxu0 0.0
        %676 = vmatprep.subr.mxu0 0.0
        %677 = vmatpush1.msra.mxu0 0.0
        %678 = vmatprep.subr.mxu0 0.0
        %679 = vmatpush1.msra.mxu0 0.0
        %680 = vmatprep.subr.mxu0 0.0
        %681 = vmatpush1.msra.mxu0 0.0
        %682 = vmatprep.mubr.f32.mxu0 0.0
        %683 = vmatmul.mubr.f32.gmra.mrb[0].mxu0 %v616
        %v684 = vpop.f32.mrb[0].mxu0
        %v685 = vadd.f32 %v614, %v684
        %v686 = vpop.f32.mrb[0].mxu0
        %687 = vdwg.mxu0
        %688 = vst [vmem:[%s273] sm:$0x1] %v685
        %s689 = sand.u32 %s183, 1
        %s690 = scalar_lea.sflag [#allocation4], %s689
        %s691 = sand.u32 %s183, 1
        %s692 = scalar_lea.vmem [#allocation3], %s691
        // Predicated region
        $region49: #{tpu_custom_call.1} parent=47 // pred_check
          %p693 = pneg %p193
        $region50: #{tpu_custom_call.1} parent=47 // pred_check_branch
          %695 = sbr.rel (%p693) target = $region52
        $region51: #{tpu_custom_call.1} parent=47 // pred_region
          %s697 = ssub.s32 16, 16
          %698 = vsyncadd %s690, %s697
          %s699 = smul.addr %s23, 16
          %s700 = scalar_lea.hbm %s7, %s699
          %s702 = sshll.u32 %s692, 4
          %s703 = int_to_ptr.vmem [resolvable:$true] %s702
          %705 = dma.vmem_to_hbm [thread:$0]  %s703, 16, %s700, %s690
        $region52: #{tpu_custom_call.1} parent=47 // pred_fallthru
          _
      $region48: #{tpu_custom_call.1} parent=5 // pred_fallthru
        _
      %p706 = scmp.le.s32.totalorder 2, %s18
      // Predicated region
      $region53: #{tpu_custom_call.1} parent=5 // pred_check
        %p707 = pneg %p706
      $region54: #{tpu_custom_call.1} parent=5 // pred_check_branch
        %709 = sbr.rel (%p707) target = $region56
      $region55: #{tpu_custom_call.1} parent=5 // pred_region
        %s710 = ssub.s32 %s18, 2
        // Predicated region
        $region57: #{tpu_custom_call.1} parent=55 // pred_check
          %p711 = pneg %p199
        $region58: #{tpu_custom_call.1} parent=55 // pred_check_branch
          %713 = sbr.rel (%p711) target = $region60
        $region59: #{tpu_custom_call.1} parent=55 // pred_region
          %s714 = sand.u32 %s184, 1
          %s715 = scalar_lea.sflag [#allocation4], %s714
          %s716 = sand.u32 %s184, 1
          %s717 = scalar_lea.vmem [#allocation3], %s716
          %718 = dma.done %s715, 16
        $region60: #{tpu_custom_call.1} parent=55 // pred_fallthru
          _
      $region56: #{tpu_custom_call.1} parent=5 // pred_fallthru
        _
    $region6: #{tpu_custom_call.1} parent=1 // loop_footer
      %s22 = sadd.s32 1, %s18
    $region7: #{tpu_custom_call.1} parent=1 // loop_footer_branch
      %17 = sbr.rel target = $region3
    $region8: #{tpu_custom_call.1} parent=1 // loop_exit
      _
    %719 = vsyncpa [#allocation4], 1
    %s720 = scalar_lea.sflag [#allocation4], 1
    %721 = vsyncpa %s720, 1

</llo_original>
